<compile_context>
chip_gen: v7x
topology: tpu7x:2x2x1
jax: 0.10.0
libtpu: 0.0.40
codegen_flags: <defaults>
</compile_context>

<pallas_src>
import functools

import jax
import jax.numpy as jnp
from jax import lax
from jax.experimental import pallas as pl
from jax.experimental.pallas import tpu as pltpu


def _conv1d_lrelu_kernel(x_ref, w_ref, b_ref, o_ref, *scratch, block_n, c_in,
                         c_out, ksize, stride, padding, l_in, l_out, slope):
    """Conv1d + bias + LeakyReLU for one batch tile.

    Layout: batch/channels folded on sublanes, length on lanes.
      x_ref: (block_n * c_in, l_in)     rows ordered [sample-major, channel-minor]
      w_ref: (ksize, c_out, c_in)       per-tap weight matrices
      b_ref: (c_out, 1)
      o_ref: (block_n * c_out, l_out)
      scratch (only when padding > 0):
        xpad_ref: (block_n * c_in, l_in + 2*padding)  zero-padded input copy
    """
    if padding > 0:
        xpad_ref, = scratch
        # Zero ONLY the halo lane columns (not the whole buffer), then copy the
        # interior once.  This is the only extra store pass in the kernel.
        halo = jnp.zeros((block_n * c_in, padding), dtype=x_ref.dtype)
        xpad_ref[:, :padding] = halo
        xpad_ref[:, padding + l_in:] = halo
        xpad_ref[:, padding:padding + l_in] = x_ref[...]
        src = xpad_ref
    else:
        src = x_ref

    w_all = w_ref[...]                                        # (K, c_out, c_in)
    # Hoisted bias broadcast (avoid re-broadcasting inside the loops).
    bias0 = jnp.broadcast_to(b_ref[...], (c_out, l_out)).astype(jnp.float32)

    for n in range(block_n):                                  # static unrolled loop
        r_in = n * c_in
        acc = bias0                                           # f32 accumulator (vregs)
        for k in range(ksize):                                # direct tap accumulation
            if stride == 1:
                xw = src[r_in:r_in + c_in, k:k + l_out]
            else:
                # TODO(synk): for stride>1, replace K strided lane reads with a
                # single polyphase decimation of the padded window.
                xw = src[r_in:r_in + c_in, pl.ds(k, l_out, stride=stride)]
            acc = acc + jnp.dot(w_all[k], xw,
                                preferred_element_type=jnp.float32)
        y = jnp.where(acc > 0, acc, slope * acc)              # LeakyReLU(slope)
        o_ref[n * c_out:(n + 1) * c_out, :] = y.astype(o_ref.dtype)


def _pick_block_n(n, c_in, c_out, per_sample_bytes, budget_bytes, min_steps=16):
    """Largest batch tile that (a) keeps the block's sublane dims a multiple of 8
    (or covers the full array), (b) fits the VMEM byte budget, and (c) leaves
    enough grid steps for the double-buffered pipeline / both TensorCores."""
    def aligned(d):
        return d == n or ((d * c_in) % 8 == 0 and (d * c_out) % 8 == 0)

    divisors = [d for d in range(1, n + 1) if n % d == 0 and aligned(d)]
    fitting = [d for d in divisors if d * per_sample_bytes <= budget_bytes]
    if not fitting:
        fitting = [divisors[0]]          # smallest aligned divisor (correctness first)
    for target in (min_steps, 8, 2, 1):
        cand = [d for d in fitting if n // d >= target]
        if cand:
            return max(cand)
    return min(fitting)


def conv_unit_1d(x_ncl, weight, bias, *, stride=1, padding=0, slope=0.2,
                 block_n=None):
    """Forward of ConvUnit1d: Conv1d(stride, padding) + LeakyReLU(slope).

    x_ncl:  (N, C_in, L)      PyTorch layout (only free reshapes, no transposes).
    weight: (C_out, C_in, K)  PyTorch layout.
    bias:   (C_out,)
    Returns (N, C_out, L_out), matching nn.Conv1d + LeakyReLU(slope).
    """
    n, c_in, l = (int(s) for s in x_ncl.shape)
    c_out, c_in_w, k = (int(s) for s in weight.shape)
    assert c_in_w == c_in, "weight/input channel mismatch"
    l_out = (l + 2 * padding - k) // stride + 1
    l_pad = l + 2 * padding
    itemsize = x_ncl.dtype.itemsize

    # Resident bytes per batch sample: double-buffered in/out blocks + pad scratch.
    per_sample = itemsize * (2 * c_in * l + 2 * c_out * l_out
                             + (c_in * l_pad if padding > 0 else 0))
    const_bytes = 2 * int(weight.size + bias.size) * weight.dtype.itemsize
    budget = (24 << 20) - const_bytes            # leaves headroom on v7x (64 MiB)

    if block_n is None:
        block_n = _pick_block_n(n, c_in, c_out, per_sample, budget)
    assert n % block_n == 0, "batch tile must divide N"
    assert block_n == n or ((block_n * c_in) % 8 == 0
                            and (block_n * c_out) % 8 == 0), "tile not sublane-aligned"

    # Free contiguous reshapes (no HBM repacking): fold (N, C) onto sublanes.
    x2 = x_ncl.reshape(n * c_in, l)
    w_t = jnp.transpose(weight, (2, 0, 1))       # (K, C_out, C_in), tiny
    b2 = bias.reshape(c_out, 1)

    kern = functools.partial(
        _conv1d_lrelu_kernel, block_n=block_n, c_in=c_in, c_out=c_out,
        ksize=k, stride=stride, padding=padding, l_in=l, l_out=l_out, slope=slope)

    scratch = []
    if padding > 0:
        scratch.append(pltpu.VMEM((block_n * c_in, l_pad), x_ncl.dtype))

    resident = block_n * per_sample + const_bytes + 4 * c_out * l_out
    vmem_limit = int(min(100 << 20, max(48 << 20, resident * 5 // 4 + (2 << 20))))

    flops = 2 * n * l_out * k * c_in * c_out
    bytes_accessed = (x2.size * itemsize
                      + w_t.size * w_t.dtype.itemsize
                      + b2.size * b2.dtype.itemsize
                      + n * c_out * l_out * itemsize)

    # TODO(synk): for very long sequences add an L_out grid axis with halo'd
    # (overlapping, lane-dense multiple-of-128) input blocks; full-L blocks are
    # fine at these model sizes.
    out2 = pl.pallas_call(
        kern,
        out_shape=jax.ShapeDtypeStruct((n * c_out, l_out), x_ncl.dtype),
        grid=(n // block_n,),
        in_specs=[
            pl.BlockSpec((block_n * c_in, l), lambda i: (i, 0)),
            pl.BlockSpec((k, c_out, c_in), lambda i: (0, 0, 0)),
            pl.BlockSpec((c_out, 1), lambda i: (0, 0)),
        ],
        out_specs=pl.BlockSpec((block_n * c_out, l_out), lambda i: (i, 0)),
        scratch_shapes=scratch,
        compiler_params=pltpu.CompilerParams(
            dimension_semantics=("parallel",),
            vmem_limit_bytes=vmem_limit),
        cost_estimate=pl.CostEstimate(
            flops=flops, transcendentals=0, bytes_accessed=bytes_accessed),
    )(x2, w_t, b2)

    return out2.reshape(n, c_out, l_out)


def _reference(x_ncl, weight, bias, *, stride, padding, slope):
    """Pure-JAX reference (conv_general_dilated + LeakyReLU)."""
    y = lax.conv_general_dilated(
        x_ncl.astype(jnp.float32),
        weight.astype(jnp.float32),
        window_strides=(stride,),
        padding=[(padding, padding)],
        dimension_numbers=("NCH", "OIH", "NCH"),
    ) + bias.reshape(1, -1, 1)
    return jnp.where(y > 0, y, slope * y)


if __name__ == "__main__":
    # ConvUnit1d(in_channels=4, out_channels=8, kernel=3, stride=1, padding=1)
    # applied to a (batch=2, channels=4, length=16) input.
    N, C_IN, C_OUT, L, K, STRIDE, PAD = 2, 4, 8, 16, 3, 1, 1

    key = jax.random.PRNGKey(0)
    kx, kw, kb = jax.random.split(key, 3)

    x = jax.random.normal(kx, (N, C_IN, L), dtype=jnp.float32)

    # PyTorch-style uniform init (bound = 1/sqrt(C_in*K)).
    bound = 1.0 / jnp.sqrt(jnp.float32(C_IN * K))
    weight = jax.random.uniform(kw, (C_OUT, C_IN, K), minval=-bound, maxval=bound,
                                dtype=jnp.float32)
    bias = jax.random.uniform(kb, (C_OUT,), minval=-bound, maxval=bound,
                              dtype=jnp.float32)

    out = conv_unit_1d(x, weight, bias, stride=STRIDE, padding=PAD, slope=0.2)
    out = jax.block_until_ready(out)

    ref = _reference(x, weight, bias, stride=STRIDE, padding=PAD, slope=0.2)
    assert out.shape == (N, C_OUT, (L + 2 * PAD - K) // STRIDE + 1)
    assert jnp.allclose(out, ref, atol=1e-5, rtol=1e-5), "mismatch vs JAX reference"

    print("KERNEL_OK")
</pallas_src>

<mosaic_0001>
module attributes {stable_mosaic.version = 11 : i64} {
  func.func @_conv1d_lrelu_kernel(%arg0: i32, %arg1: memref<8x16xf32, #tpu.memory_space<vmem>>, %arg2: memref<3x8x4xf32, #tpu.memory_space<vmem>>, %arg3: memref<8x1xf32, #tpu.memory_space<vmem>>, %arg4: memref<16x16xf32, #tpu.memory_space<vmem>>, %arg5: memref<8x18xf32, #tpu.memory_space<vmem>>) attributes {dimension_semantics = [#tpu.dimension_semantics<parallel>], iteration_bounds = array<i64: 1>, scalar_prefetch = 0 : i64, scratch_operands = 1 : i64, tpu.core_type = #tpu.core_type<tc>, window_params = [{transform_indices = @transform_0, window_bounds = array<i64: 8, 16>}, {pipeline_mode = #tpu.pipeline_mode<synchronous>, transform_indices = @transform_1, window_bounds = array<i64: 3, 8, 4>}, {pipeline_mode = #tpu.pipeline_mode<synchronous>, transform_indices = @transform_2, window_bounds = array<i64: 8, 1>}, {transform_indices = @transform_3, window_bounds = array<i64: 16, 16>}]} {
    %cst = arith.constant 0.000000e+00 : f32
    %0 = vector.broadcast %cst : f32 to vector<8x1xf32>
    %c0 = arith.constant 0 : index
    %c0_0 = arith.constant 0 : index
    %1 = vector.load %arg5[%c0, %c0_0] : memref<8x18xf32, #tpu.memory_space<vmem>>, vector<8x1xf32>
    tpu.vector_store %arg5[%c0, %c0_0], %0 {strides = array<i32>} : memref<8x18xf32, #tpu.memory_space<vmem>>, vector<8x1xf32>,
    %c0_1 = arith.constant 0 : index
    %c17 = arith.constant 17 : index
    %2 = vector.load %arg5[%c0_1, %c17] : memref<8x18xf32, #tpu.memory_space<vmem>>, vector<8x1xf32>
    tpu.vector_store %arg5[%c0_1, %c17], %0 {strides = array<i32>} : memref<8x18xf32, #tpu.memory_space<vmem>>, vector<8x1xf32>,
    %c0_2 = arith.constant 0 : index
    %c0_3 = arith.constant 0 : index
    %3 = vector.load %arg1[%c0_2, %c0_3] : memref<8x16xf32, #tpu.memory_space<vmem>>, vector<8x16xf32>
    %c0_4 = arith.constant 0 : index
    %c1 = arith.constant 1 : index
    %4 = vector.load %arg5[%c0_4, %c1] : memref<8x18xf32, #tpu.memory_space<vmem>>, vector<8x16xf32>
    tpu.vector_store %arg5[%c0_4, %c1], %3 {strides = array<i32>} : memref<8x18xf32, #tpu.memory_space<vmem>>, vector<8x16xf32>,
    %c0_5 = arith.constant 0 : index
    %c0_6 = arith.constant 0 : index
    %c0_7 = arith.constant 0 : index
    %5 = vector.load %arg2[%c0_5, %c0_6, %c0_7] : memref<3x8x4xf32, #tpu.memory_space<vmem>>, vector<3x8x4xf32>
    %c0_8 = arith.constant 0 : index
    %c0_9 = arith.constant 0 : index
    %6 = vector.load %arg3[%c0_8, %c0_9] : memref<8x1xf32, #tpu.memory_space<vmem>>, vector<8x1xf32>
    %7 = vector.shape_cast %6 : vector<8x1xf32> to vector<8x1xf32>
    %8 = vector.broadcast %7 : vector<8x1xf32> to vector<8x16xf32>
    %c0_10 = arith.constant 0 : index
    %c0_11 = arith.constant 0 : index
    %9 = vector.load %arg5[%c0_10, %c0_11] : memref<8x18xf32, #tpu.memory_space<vmem>>, vector<4x16xf32>
    %10 = vector.extract_strided_slice %5 {offsets = [0, 0, 0], sizes = [1, 8, 4], strides = [1, 1, 1]} : vector<3x8x4xf32> to vector<1x8x4xf32>
    %11 = vector.shape_cast %10 : vector<1x8x4xf32> to vector<8x4xf32>
    %cst_12 = arith.constant dense<0.000000e+00> : vector<8x16xf32>
    %12 = tpu.matmul %11, %9, %cst_12 {dimension_numbers = #tpu.dot_dimension_numbers<[1], [0], [0], [1], [0, 0, 1, 1], [], []>} : vector<8x4xf32>, vector<4x16xf32>, vector<8x16xf32> -> vector<8x16xf32>
    %13 = arith.addf %8, %12 : vector<8x16xf32>
    %c0_13 = arith.constant 0 : index
    %c1_14 = arith.constant 1 : index
    %14 = vector.load %arg5[%c0_13, %c1_14] : memref<8x18xf32, #tpu.memory_space<vmem>>, vector<4x16xf32>
    %15 = vector.extract_strided_slice %5 {offsets = [1, 0, 0], sizes = [1, 8, 4], strides = [1, 1, 1]} : vector<3x8x4xf32> to vector<1x8x4xf32>
    %16 = vector.shape_cast %15 : vector<1x8x4xf32> to vector<8x4xf32>
    %cst_15 = arith.constant dense<0.000000e+00> : vector<8x16xf32>
    %17 = tpu.matmul %16, %14, %cst_15 {dimension_numbers = #tpu.dot_dimension_numbers<[1], [0], [0], [1], [0, 0, 1, 1], [], []>} : vector<8x4xf32>, vector<4x16xf32>, vector<8x16xf32> -> vector<8x16xf32>
    %18 = arith.addf %13, %17 : vector<8x16xf32>
    %c0_16 = arith.constant 0 : index
    %c2 = arith.constant 2 : index
    %19 = vector.load %arg5[%c0_16, %c2] : memref<8x18xf32, #tpu.memory_space<vmem>>, vector<4x16xf32>
    %20 = vector.extract_strided_slice %5 {offsets = [2, 0, 0], sizes = [1, 8, 4], strides = [1, 1, 1]} : vector<3x8x4xf32> to vector<1x8x4xf32>
    %21 = vector.shape_cast %20 : vector<1x8x4xf32> to vector<8x4xf32>
    %cst_17 = arith.constant dense<0.000000e+00> : vector<8x16xf32>
    %22 = tpu.matmul %21, %19, %cst_17 {dimension_numbers = #tpu.dot_dimension_numbers<[1], [0], [0], [1], [0, 0, 1, 1], [], []>} : vector<8x4xf32>, vector<4x16xf32>, vector<8x16xf32> -> vector<8x16xf32>
    %23 = arith.addf %18, %22 : vector<8x16xf32>
    %cst_18 = arith.constant 0.000000e+00 : f32
    %24 = vector.broadcast %cst_18 : f32 to vector<8x16xf32>
    %25 = arith.cmpf ogt, %23, %24 : vector<8x16xf32>
    %cst_19 = arith.constant 2.000000e-01 : f32
    %26 = vector.broadcast %cst_19 : f32 to vector<8x16xf32>
    %27 = arith.mulf %26, %23 : vector<8x16xf32>
    %28 = arith.select %25, %23, %27 : vector<8x16xi1>, vector<8x16xf32>
    %c0_20 = arith.constant 0 : index
    %c0_21 = arith.constant 0 : index
    %29 = vector.load %arg4[%c0_20, %c0_21] : memref<16x16xf32, #tpu.memory_space<vmem>>, vector<8x16xf32>
    tpu.vector_store %arg4[%c0_20, %c0_21], %28 {strides = array<i32>} : memref<16x16xf32, #tpu.memory_space<vmem>>, vector<8x16xf32>,
    %c4 = arith.constant 4 : index
    %c0_22 = arith.constant 0 : index
    %30 = vector.load %arg5[%c4, %c0_22] : memref<8x18xf32, #tpu.memory_space<vmem>>, vector<4x16xf32>
    %31 = vector.extract_strided_slice %5 {offsets = [0, 0, 0], sizes = [1, 8, 4], strides = [1, 1, 1]} : vector<3x8x4xf32> to vector<1x8x4xf32>
    %32 = vector.shape_cast %31 : vector<1x8x4xf32> to vector<8x4xf32>
    %cst_23 = arith.constant dense<0.000000e+00> : vector<8x16xf32>
    %33 = tpu.matmul %32, %30, %cst_23 {dimension_numbers = #tpu.dot_dimension_numbers<[1], [0], [0], [1], [0, 0, 1, 1], [], []>} : vector<8x4xf32>, vector<4x16xf32>, vector<8x16xf32> -> vector<8x16xf32>
    %34 = arith.addf %8, %33 : vector<8x16xf32>
    %c4_24 = arith.constant 4 : index
    %c1_25 = arith.constant 1 : index
    %35 = vector.load %arg5[%c4_24, %c1_25] : memref<8x18xf32, #tpu.memory_space<vmem>>, vector<4x16xf32>
    %36 = vector.extract_strided_slice %5 {offsets = [1, 0, 0], sizes = [1, 8, 4], strides = [1, 1, 1]} : vector<3x8x4xf32> to vector<1x8x4xf32>
    %37 = vector.shape_cast %36 : vector<1x8x4xf32> to vector<8x4xf32>
    %cst_26 = arith.constant dense<0.000000e+00> : vector<8x16xf32>
    %38 = tpu.matmul %37, %35, %cst_26 {dimension_numbers = #tpu.dot_dimension_numbers<[1], [0], [0], [1], [0, 0, 1, 1], [], []>} : vector<8x4xf32>, vector<4x16xf32>, vector<8x16xf32> -> vector<8x16xf32>
    %39 = arith.addf %34, %38 : vector<8x16xf32>
    %c4_27 = arith.constant 4 : index
    %c2_28 = arith.constant 2 : index
    %40 = vector.load %arg5[%c4_27, %c2_28] : memref<8x18xf32, #tpu.memory_space<vmem>>, vector<4x16xf32>
    %41 = vector.extract_strided_slice %5 {offsets = [2, 0, 0], sizes = [1, 8, 4], strides = [1, 1, 1]} : vector<3x8x4xf32> to vector<1x8x4xf32>
    %42 = vector.shape_cast %41 : vector<1x8x4xf32> to vector<8x4xf32>
    %cst_29 = arith.constant dense<0.000000e+00> : vector<8x16xf32>
    %43 = tpu.matmul %42, %40, %cst_29 {dimension_numbers = #tpu.dot_dimension_numbers<[1], [0], [0], [1], [0, 0, 1, 1], [], []>} : vector<8x4xf32>, vector<4x16xf32>, vector<8x16xf32> -> vector<8x16xf32>
    %44 = arith.addf %39, %43 : vector<8x16xf32>
    %cst_30 = arith.constant 0.000000e+00 : f32
    %45 = vector.broadcast %cst_30 : f32 to vector<8x16xf32>
    %46 = arith.cmpf ogt, %44, %45 : vector<8x16xf32>
    %cst_31 = arith.constant 2.000000e-01 : f32
    %47 = vector.broadcast %cst_31 : f32 to vector<8x16xf32>
    %48 = arith.mulf %47, %44 : vector<8x16xf32>
    %49 = arith.select %46, %44, %48 : vector<8x16xi1>, vector<8x16xf32>
    %c8 = arith.constant 8 : index
    %c0_32 = arith.constant 0 : index
    %50 = vector.load %arg4[%c8, %c0_32] : memref<16x16xf32, #tpu.memory_space<vmem>>, vector<8x16xf32>
    tpu.vector_store %arg4[%c8, %c0_32], %49 {strides = array<i32>} : memref<16x16xf32, #tpu.memory_space<vmem>>, vector<8x16xf32>,
    return
  }
  func.func @transform_0(%arg0: i32) -> (i32, i32) {
    %c0_i32 = arith.constant 0 : i32
    %c0_i32_0 = arith.constant 0 : i32
    return %arg0, %c0_i32 : i32, i32
  }
  func.func @transform_1(%arg0: i32) -> (i32, i32, i32) {
    %c0_i32 = arith.constant 0 : i32
    %c0_i32_0 = arith.constant 0 : i32
    %c0_i32_1 = arith.constant 0 : i32
    %c0_i32_2 = arith.constant 0 : i32
    return %c0_i32, %c0_i32_0, %c0_i32_1 : i32, i32, i32
  }
  func.func @transform_2(%arg0: i32) -> (i32, i32) {
    %c0_i32 = arith.constant 0 : i32
    %c0_i32_0 = arith.constant 0 : i32
    %c0_i32_1 = arith.constant 0 : i32
    return %c0_i32, %c0_i32_0 : i32, i32
  }
  func.func @transform_3(%arg0: i32) -> (i32, i32) {
    %c0_i32 = arith.constant 0 : i32
    %c0_i32_0 = arith.constant 0 : i32
    return %arg0, %c0_i32 : i32, i32
  }
}

</mosaic_0001>

<llo_original>
// kernel: tpu_custom_call.1
$region0: #{tpu_custom_call.1}
  #allocation0 [shape = 'u32[]', space=smem, size = 0x4, offset = 0x4, fixed_abs, tag = 'smem constant byte address 0x4 - core index']
  #allocation1 [shape = 'u32[144,128]{1,0:T(1,128)}', space=vmem, size = 0x12000, scoped, tag = 'internal scratch']
  #allocation2 [shape = 'f32[8,18]{1,0:T(8,128)}', space=vmem, size = 0x1000, scoped, tag = 'scratch operand']
  %s0 = inlined_call_operand.vmem [shape: f32[8,16], index: 0, kind: input, shape index: {}]
  %s1 = inlined_call_operand.vmem [shape: f32[3,8,4], index: 1, kind: input, shape index: {}]
  %s2 = inlined_call_operand.vmem [shape: f32[8,1], index: 2, kind: input, shape index: {}]
  %s3 = inlined_call_operand.hbm [shape: f32[16,16], index: 3, kind: output, shape index: {}]
  %s4 = sld [smem:[#allocation0]]
  $region22: #{tpu_custom_call.1} parent=0
    _
  %s6 = ssub.s32 1, %s4
  %s7 = scalar_select 0, %s6, %s4
  $region1: #{tpu_custom_call.1} parent=0
    #allocation3 [shape = 'u8[8192]{0}', space=vmem, size = 0x2000, scoped, tag = 'output window, operand 0, single buffered']
    #allocation4 [shape = 's32[1]{0}', space=sflag, size = 0x4, scoped, tag = 'scoped memory for tpu_custom_call.1']
    %8 = vsyncpa [#allocation4], 0
    // Predicated region
    $region2: #{tpu_custom_call.1} parent=1 // pred_check
      _
    $region3: #{tpu_custom_call.1} parent=1 // pred_check_branch
      %10 = sbr.rel (0) target = $region5
    $region4: #{tpu_custom_call.1} parent=1 // pred_region
      _
    $region5: #{tpu_custom_call.1} parent=1 // pred_fallthru
      _
    // Predicated region
    $region6: #{tpu_custom_call.1} parent=1 // pred_check
      _
    $region7: #{tpu_custom_call.1} parent=1 // pred_check_branch
      %12 = sbr.rel (0) target = $region9
    $region8: #{tpu_custom_call.1} parent=1 // pred_region
      _
    $region9: #{tpu_custom_call.1} parent=1 // pred_fallthru
      _
    // Predicated region
    $region10: #{tpu_custom_call.1} parent=1 // pred_check
      _
    $region11: #{tpu_custom_call.1} parent=1 // pred_check_branch
      %14 = sbr.rel (0) target = $region13
    $region12: #{tpu_custom_call.1} parent=1 // pred_region
      _
    $region13: #{tpu_custom_call.1} parent=1 // pred_fallthru
      _
    %vm15 = vcmask 7168
    %16 = vst.msk [vmem:[#allocation2] sm:$0xff] %vm15, 0.0
    %vm17 = vcmask 146568
    %18 = vst.msk [vmem:[#allocation2] sm:$0xff] %vm17, 0.0
    %v19 = vld [vmem:[%s0] sm:$0xff]
    %21 = vrot.lane.b32.xlu0 %v19, 1
    %v22 = vpop.permute.xlu0 %21
    %vm24 = vcmask 138248
    %25 = vst.msk [vmem:[#allocation2] sm:$0xff] %vm24, %v22
    %v26 = vld [vmem:[%s1] sm:$0xff]
    %v27 = vld [vmem:[%s1 + $0x8] sm:$0xff]
    %v28 = vld [vmem:[%s1 + $0x10] sm:$0xff]
    %v29 = vld [vmem:[%s2] sm:$0xff]
    %31 = vset.pattern.permute.xlu0 0
    %32 = vperm.xlu0 %31, %v29
    %v33 = vpop.permute.xlu0 %32
    %v35 = vld [vmem:[#allocation2] sm:$0xf]
    %vm36 = vcmask 31744
    %v38 = vsel %vm36, %v26, 0
    %vm40 = vcmask 1043456
    %v42 = vsel %vm40, %v35, 0
    %44 = vmatprep.subr.mxu0 0.0
    %45 = vmatpush1.msra.mxu0 %v42
    %46 = vmatprep.subr.mxu0 0.0
    %47 = vmatpush1.msra.mxu0 0.0
    %48 = vmatprep.subr.mxu0 0.0
    %49 = vmatpush1.msra.mxu0 0.0
    %50 = vmatprep.subr.mxu0 0.0
    %51 = vmatpush1.msra.mxu0 0.0
    %52 = vmatprep.subr.mxu0 0.0
    %53 = vmatpush1.msra.mxu0 0.0
    %54 = vmatprep.subr.mxu0 0.0
    %55 = vmatpush1.msra.mxu0 0.0
    %56 = vmatprep.subr.mxu0 0.0
    %57 = vmatpush1.msra.mxu0 0.0
    %58 = vmatprep.subr.mxu0 0.0
    %59 = vmatpush1.msra.mxu0 0.0
    %60 = vmatprep.subr.mxu0 0.0
    %61 = vmatpush1.msra.mxu0 0.0
    %62 = vmatprep.subr.mxu0 0.0
    %63 = vmatpush1.msra.mxu0 0.0
    %64 = vmatprep.subr.mxu0 0.0
    %65 = vmatpush1.msra.mxu0 0.0
    %66 = vmatprep.subr.mxu0 0.0
    %67 = vmatpush1.msra.mxu0 0.0
    %68 = vmatprep.subr.mxu0 0.0
    %69 = vmatpush1.msra.mxu0 0.0
    %70 = vmatprep.subr.mxu0 0.0
    %71 = vmatpush1.msra.mxu0 0.0
    %72 = vmatprep.subr.mxu0 0.0
    %73 = vmatpush1.msra.mxu0 0.0
    %74 = vmatprep.subr.mxu0 0.0
    %75 = vmatpush1.msra.mxu0 0.0
    %76 = vmatprep.subr.mxu0 0.0
    %77 = vmatpush1.msra.mxu0 0.0
    %78 = vmatprep.subr.mxu0 0.0
    %79 = vmatpush1.msra.mxu0 0.0
    %80 = vmatprep.subr.mxu0 0.0
    %81 = vmatpush1.msra.mxu0 0.0
    %82 = vmatprep.subr.mxu0 0.0
    %83 = vmatpush1.msra.mxu0 0.0
    %84 = vmatprep.subr.mxu0 0.0
    %85 = vmatpush1.msra.mxu0 0.0
    %86 = vmatprep.subr.mxu0 0.0
    %87 = vmatpush1.msra.mxu0 0.0
    %88 = vmatprep.subr.mxu0 0.0
    %89 = vmatpush1.msra.mxu0 0.0
    %90 = vmatprep.subr.mxu0 0.0
    %91 = vmatpush1.msra.mxu0 0.0
    %92 = vmatprep.subr.mxu0 0.0
    %93 = vmatpush1.msra.mxu0 0.0
    %94 = vmatprep.subr.mxu0 0.0
    %95 = vmatpush1.msra.mxu0 0.0
    %96 = vmatprep.subr.mxu0 0.0
    %97 = vmatpush1.msra.mxu0 0.0
    %98 = vmatprep.subr.mxu0 0.0
    %99 = vmatpush1.msra.mxu0 0.0
    %100 = vmatprep.subr.mxu0 0.0
    %101 = vmatpush1.msra.mxu0 0.0
    %102 = vmatprep.subr.mxu0 0.0
    %103 = vmatpush1.msra.mxu0 0.0
    %104 = vmatprep.subr.mxu0 0.0
    %105 = vmatpush1.msra.mxu0 0.0
    %106 = vmatprep.subr.mxu0 0.0
    %107 = vmatpush1.msra.mxu0 0.0
    %108 = vmatprep.mubr.f32.mxu0 0.0
    %109 = vmatmul.mubr.f32.gmra.mrb[0].mxu0 %v38
    %v110 = vpop.f32.mrb[0].mxu0
    %v111 = vadd.f32 0.0, %v110
    %v112 = vpop.f32.mrb[0].mxu0
    %113 = vdwg.mxu0
    %v114 = vadd.f32 %v33, %v111
    %115 = vrot.lane.b32.xlu0 %v35, 127
    %v116 = vpop.permute.xlu0 %115
    %v118 = vsel %vm36, %v27, 0
    %v120 = vsel %vm40, %v116, 0
    %122 = vmatprep.subr.mxu0 0.0
    %123 = vmatpush1.msra.mxu0 %v120
    %124 = vmatprep.subr.mxu0 0.0
    %125 = vmatpush1.msra.mxu0 0.0
    %126 = vmatprep.subr.mxu0 0.0
    %127 = vmatpush1.msra.mxu0 0.0
    %128 = vmatprep.subr.mxu0 0.0
    %129 = vmatpush1.msra.mxu0 0.0
    %130 = vmatprep.subr.mxu0 0.0
    %131 = vmatpush1.msra.mxu0 0.0
    %132 = vmatprep.subr.mxu0 0.0
    %133 = vmatpush1.msra.mxu0 0.0
    %134 = vmatprep.subr.mxu0 0.0
    %135 = vmatpush1.msra.mxu0 0.0
    %136 = vmatprep.subr.mxu0 0.0
    %137 = vmatpush1.msra.mxu0 0.0
    %138 = vmatprep.subr.mxu0 0.0
    %139 = vmatpush1.msra.mxu0 0.0
    %140 = vmatprep.subr.mxu0 0.0
    %141 = vmatpush1.msra.mxu0 0.0
    %142 = vmatprep.subr.mxu0 0.0
    %143 = vmatpush1.msra.mxu0 0.0
    %144 = vmatprep.subr.mxu0 0.0
    %145 = vmatpush1.msra.mxu0 0.0
    %146 = vmatprep.subr.mxu0 0.0
    %147 = vmatpush1.msra.mxu0 0.0
    %148 = vmatprep.subr.mxu0 0.0
    %149 = vmatpush1.msra.mxu0 0.0
    %150 = vmatprep.subr.mxu0 0.0
    %151 = vmatpush1.msra.mxu0 0.0
    %152 = vmatprep.subr.mxu0 0.0
    %153 = vmatpush1.msra.mxu0 0.0
    %154 = vmatprep.subr.mxu0 0.0
    %155 = vmatpush1.msra.mxu0 0.0
    %156 = vmatprep.subr.mxu0 0.0
    %157 = vmatpush1.msra.mxu0 0.0
    %158 = vmatprep.subr.mxu0 0.0
    %159 = vmatpush1.msra.mxu0 0.0
    %160 = vmatprep.subr.mxu0 0.0
    %161 = vmatpush1.msra.mxu0 0.0
    %162 = vmatprep.subr.mxu0 0.0
    %163 = vmatpush1.msra.mxu0 0.0
    %164 = vmatprep.subr.mxu0 0.0
    %165 = vmatpush1.msra.mxu0 0.0
    %166 = vmatprep.subr.mxu0 0.0
    %167 = vmatpush1.msra.mxu0 0.0
    %168 = vmatprep.subr.mxu0 0.0
    %169 = vmatpush1.msra.mxu0 0.0
    %170 = vmatprep.subr.mxu0 0.0
    %171 = vmatpush1.msra.mxu0 0.0
    %172 = vmatprep.subr.mxu0 0.0
    %173 = vmatpush1.msra.mxu0 0.0
    %174 = vmatprep.subr.mxu0 0.0
    %175 = vmatpush1.msra.mxu0 0.0
    %176 = vmatprep.subr.mxu0 0.0
    %177 = vmatpush1.msra.mxu0 0.0
    %178 = vmatprep.subr.mxu0 0.0
    %179 = vmatpush1.msra.mxu0 0.0
    %180 = vmatprep.subr.mxu0 0.0
    %181 = vmatpush1.msra.mxu0 0.0
    %182 = vmatprep.subr.mxu0 0.0
    %183 = vmatpush1.msra.mxu0 0.0
    %184 = vmatprep.subr.mxu0 0.0
    %185 = vmatpush1.msra.mxu0 0.0
    %186 = vmatprep.mubr.f32.mxu0 0.0
    %187 = vmatmul.mubr.f32.gmra.mrb[0].mxu0 %v118
    %v188 = vpop.f32.mrb[0].mxu0
    %v189 = vadd.f32 0.0, %v188
    %v190 = vpop.f32.mrb[0].mxu0
    %191 = vdwg.mxu0
    %v192 = vadd.f32 %v114, %v189
    %193 = vrot.lane.b32.xlu0 %v35, 126
    %v194 = vpop.permute.xlu0 %193
    %v196 = vsel %vm36, %v28, 0
    %v198 = vsel %vm40, %v194, 0
    %200 = vmatprep.subr.mxu0 0.0
    %201 = vmatpush1.msra.mxu0 %v198
    %202 = vmatprep.subr.mxu0 0.0
    %203 = vmatpush1.msra.mxu0 0.0
    %204 = vmatprep.subr.mxu0 0.0
    %205 = vmatpush1.msra.mxu0 0.0
    %206 = vmatprep.subr.mxu0 0.0
    %207 = vmatpush1.msra.mxu0 0.0
    %208 = vmatprep.subr.mxu0 0.0
    %209 = vmatpush1.msra.mxu0 0.0
    %210 = vmatprep.subr.mxu0 0.0
    %211 = vmatpush1.msra.mxu0 0.0
    %212 = vmatprep.subr.mxu0 0.0
    %213 = vmatpush1.msra.mxu0 0.0
    %214 = vmatprep.subr.mxu0 0.0
    %215 = vmatpush1.msra.mxu0 0.0
    %216 = vmatprep.subr.mxu0 0.0
    %217 = vmatpush1.msra.mxu0 0.0
    %218 = vmatprep.subr.mxu0 0.0
    %219 = vmatpush1.msra.mxu0 0.0
    %220 = vmatprep.subr.mxu0 0.0
    %221 = vmatpush1.msra.mxu0 0.0
    %222 = vmatprep.subr.mxu0 0.0
    %223 = vmatpush1.msra.mxu0 0.0
    %224 = vmatprep.subr.mxu0 0.0
    %225 = vmatpush1.msra.mxu0 0.0
    %226 = vmatprep.subr.mxu0 0.0
    %227 = vmatpush1.msra.mxu0 0.0
    %228 = vmatprep.subr.mxu0 0.0
    %229 = vmatpush1.msra.mxu0 0.0
    %230 = vmatprep.subr.mxu0 0.0
    %231 = vmatpush1.msra.mxu0 0.0
    %232 = vmatprep.subr.mxu0 0.0
    %233 = vmatpush1.msra.mxu0 0.0
    %234 = vmatprep.subr.mxu0 0.0
    %235 = vmatpush1.msra.mxu0 0.0
    %236 = vmatprep.subr.mxu0 0.0
    %237 = vmatpush1.msra.mxu0 0.0
    %238 = vmatprep.subr.mxu0 0.0
    %239 = vmatpush1.msra.mxu0 0.0
    %240 = vmatprep.subr.mxu0 0.0
    %241 = vmatpush1.msra.mxu0 0.0
    %242 = vmatprep.subr.mxu0 0.0
    %243 = vmatpush1.msra.mxu0 0.0
    %244 = vmatprep.subr.mxu0 0.0
    %245 = vmatpush1.msra.mxu0 0.0
    %246 = vmatprep.subr.mxu0 0.0
    %247 = vmatpush1.msra.mxu0 0.0
    %248 = vmatprep.subr.mxu0 0.0
    %249 = vmatpush1.msra.mxu0 0.0
    %250 = vmatprep.subr.mxu0 0.0
    %251 = vmatpush1.msra.mxu0 0.0
    %252 = vmatprep.subr.mxu0 0.0
    %253 = vmatpush1.msra.mxu0 0.0
    %254 = vmatprep.subr.mxu0 0.0
    %255 = vmatpush1.msra.mxu0 0.0
    %256 = vmatprep.subr.mxu0 0.0
    %257 = vmatpush1.msra.mxu0 0.0
    %258 = vmatprep.subr.mxu0 0.0
    %259 = vmatpush1.msra.mxu0 0.0
    %260 = vmatprep.subr.mxu0 0.0
    %261 = vmatpush1.msra.mxu0 0.0
    %262 = vmatprep.subr.mxu0 0.0
    %263 = vmatpush1.msra.mxu0 0.0
    %264 = vmatprep.mubr.f32.mxu0 0.0
    %265 = vmatmul.mubr.f32.gmra.mrb[0].mxu0 %v196
    %v266 = vpop.f32.mrb[0].mxu0
    %v267 = vadd.f32 0.0, %v266
    %v268 = vpop.f32.mrb[0].mxu0
    %269 = vdwg.mxu0
    %v270 = vadd.f32 %v192, %v267
    %vm271 = vcmp.gt.f32.partialorder %v270, 0.0
    %v272 = vmul.f32 %v270, 0.2
    %v273 = vsel %vm271, %v270, %v272
    %vm274 = vcmask 130048
    %275 = vst.msk [vmem:[#allocation3] sm:$0xff] %vm274, %v273
    %v276 = vld [vmem:[#allocation2 + $0x4] sm:$0xf]
    %v278 = vsel %vm40, %v276, 0
    %280 = vmatprep.subr.mxu0 0.0
    %281 = vmatpush1.msra.mxu0 %v278
    %282 = vmatprep.subr.mxu0 0.0
    %283 = vmatpush1.msra.mxu0 0.0
    %284 = vmatprep.subr.mxu0 0.0
    %285 = vmatpush1.msra.mxu0 0.0
    %286 = vmatprep.subr.mxu0 0.0
    %287 = vmatpush1.msra.mxu0 0.0
    %288 = vmatprep.subr.mxu0 0.0
    %289 = vmatpush1.msra.mxu0 0.0
    %290 = vmatprep.subr.mxu0 0.0
    %291 = vmatpush1.msra.mxu0 0.0
    %292 = vmatprep.subr.mxu0 0.0
    %293 = vmatpush1.msra.mxu0 0.0
    %294 = vmatprep.subr.mxu0 0.0
    %295 = vmatpush1.msra.mxu0 0.0
    %296 = vmatprep.subr.mxu0 0.0
    %297 = vmatpush1.msra.mxu0 0.0
    %298 = vmatprep.subr.mxu0 0.0
    %299 = vmatpush1.msra.mxu0 0.0
    %300 = vmatprep.subr.mxu0 0.0
    %301 = vmatpush1.msra.mxu0 0.0
    %302 = vmatprep.subr.mxu0 0.0
    %303 = vmatpush1.msra.mxu0 0.0
    %304 = vmatprep.subr.mxu0 0.0
    %305 = vmatpush1.msra.mxu0 0.0
    %306 = vmatprep.subr.mxu0 0.0
    %307 = vmatpush1.msra.mxu0 0.0
    %308 = vmatprep.subr.mxu0 0.0
    %309 = vmatpush1.msra.mxu0 0.0
    %310 = vmatprep.subr.mxu0 0.0
    %311 = vmatpush1.msra.mxu0 0.0
    %312 = vmatprep.subr.mxu0 0.0
    %313 = vmatpush1.msra.mxu0 0.0
    %314 = vmatprep.subr.mxu0 0.0
    %315 = vmatpush1.msra.mxu0 0.0
    %316 = vmatprep.subr.mxu0 0.0
    %317 = vmatpush1.msra.mxu0 0.0
    %318 = vmatprep.subr.mxu0 0.0
    %319 = vmatpush1.msra.mxu0 0.0
    %320 = vmatprep.subr.mxu0 0.0
    %321 = vmatpush1.msra.mxu0 0.0
    %322 = vmatprep.subr.mxu0 0.0
    %323 = vmatpush1.msra.mxu0 0.0
    %324 = vmatprep.subr.mxu0 0.0
    %325 = vmatpush1.msra.mxu0 0.0
    %326 = vmatprep.subr.mxu0 0.0
    %327 = vmatpush1.msra.mxu0 0.0
    %328 = vmatprep.subr.mxu0 0.0
    %329 = vmatpush1.msra.mxu0 0.0
    %330 = vmatprep.subr.mxu0 0.0
    %331 = vmatpush1.msra.mxu0 0.0
    %332 = vmatprep.subr.mxu0 0.0
    %333 = vmatpush1.msra.mxu0 0.0
    %334 = vmatprep.subr.mxu0 0.0
    %335 = vmatpush1.msra.mxu0 0.0
    %336 = vmatprep.subr.mxu0 0.0
    %337 = vmatpush1.msra.mxu0 0.0
    %338 = vmatprep.subr.mxu0 0.0
    %339 = vmatpush1.msra.mxu0 0.0
    %340 = vmatprep.subr.mxu0 0.0
    %341 = vmatpush1.msra.mxu0 0.0
    %342 = vmatprep.subr.mxu0 0.0
    %343 = vmatpush1.msra.mxu0 0.0
    %344 = vmatprep.mubr.f32.mxu0 0.0
    %345 = vmatmul.mubr.f32.gmra.mrb[0].mxu0 %v38
    %v346 = vpop.f32.mrb[0].mxu0
    %v347 = vadd.f32 0.0, %v346
    %v348 = vpop.f32.mrb[0].mxu0
    %349 = vdwg.mxu0
    %v350 = vadd.f32 %v33, %v347
    %351 = vrot.lane.b32.xlu0 %v276, 127
    %v352 = vpop.permute.xlu0 %351
    %v353 = vsel %vm40, %v352, 0
    %355 = vmatprep.subr.mxu0 0.0
    %356 = vmatpush1.msra.mxu0 %v353
    %357 = vmatprep.subr.mxu0 0.0
    %358 = vmatpush1.msra.mxu0 0.0
    %359 = vmatprep.subr.mxu0 0.0
    %360 = vmatpush1.msra.mxu0 0.0
    %361 = vmatprep.subr.mxu0 0.0
    %362 = vmatpush1.msra.mxu0 0.0
    %363 = vmatprep.subr.mxu0 0.0
    %364 = vmatpush1.msra.mxu0 0.0
    %365 = vmatprep.subr.mxu0 0.0
    %366 = vmatpush1.msra.mxu0 0.0
    %367 = vmatprep.subr.mxu0 0.0
    %368 = vmatpush1.msra.mxu0 0.0
    %369 = vmatprep.subr.mxu0 0.0
    %370 = vmatpush1.msra.mxu0 0.0
    %371 = vmatprep.subr.mxu0 0.0
    %372 = vmatpush1.msra.mxu0 0.0
    %373 = vmatprep.subr.mxu0 0.0
    %374 = vmatpush1.msra.mxu0 0.0
    %375 = vmatprep.subr.mxu0 0.0
    %376 = vmatpush1.msra.mxu0 0.0
    %377 = vmatprep.subr.mxu0 0.0
    %378 = vmatpush1.msra.mxu0 0.0
    %379 = vmatprep.subr.mxu0 0.0
    %380 = vmatpush1.msra.mxu0 0.0
    %381 = vmatprep.subr.mxu0 0.0
    %382 = vmatpush1.msra.mxu0 0.0
    %383 = vmatprep.subr.mxu0 0.0
    %384 = vmatpush1.msra.mxu0 0.0
    %385 = vmatprep.subr.mxu0 0.0
    %386 = vmatpush1.msra.mxu0 0.0
    %387 = vmatprep.subr.mxu0 0.0
    %388 = vmatpush1.msra.mxu0 0.0
    %389 = vmatprep.subr.mxu0 0.0
    %390 = vmatpush1.msra.mxu0 0.0
    %391 = vmatprep.subr.mxu0 0.0
    %392 = vmatpush1.msra.mxu0 0.0
    %393 = vmatprep.subr.mxu0 0.0
    %394 = vmatpush1.msra.mxu0 0.0
    %395 = vmatprep.subr.mxu0 0.0
    %396 = vmatpush1.msra.mxu0 0.0
    %397 = vmatprep.subr.mxu0 0.0
    %398 = vmatpush1.msra.mxu0 0.0
    %399 = vmatprep.subr.mxu0 0.0
    %400 = vmatpush1.msra.mxu0 0.0
    %401 = vmatprep.subr.mxu0 0.0
    %402 = vmatpush1.msra.mxu0 0.0
    %403 = vmatprep.subr.mxu0 0.0
    %404 = vmatpush1.msra.mxu0 0.0
    %405 = vmatprep.subr.mxu0 0.0
    %406 = vmatpush1.msra.mxu0 0.0
    %407 = vmatprep.subr.mxu0 0.0
    %408 = vmatpush1.msra.mxu0 0.0
    %409 = vmatprep.subr.mxu0 0.0
    %410 = vmatpush1.msra.mxu0 0.0
    %411 = vmatprep.subr.mxu0 0.0
    %412 = vmatpush1.msra.mxu0 0.0
    %413 = vmatprep.subr.mxu0 0.0
    %414 = vmatpush1.msra.mxu0 0.0
    %415 = vmatprep.subr.mxu0 0.0
    %416 = vmatpush1.msra.mxu0 0.0
    %417 = vmatprep.subr.mxu0 0.0
    %418 = vmatpush1.msra.mxu0 0.0
    %419 = vmatprep.mubr.f32.mxu0 0.0
    %420 = vmatmul.mubr.f32.gmra.mrb[0].mxu0 %v118
    %v421 = vpop.f32.mrb[0].mxu0
    %v422 = vadd.f32 0.0, %v421
    %v423 = vpop.f32.mrb[0].mxu0
    %424 = vdwg.mxu0
    %v425 = vadd.f32 %v350, %v422
    %426 = vrot.lane.b32.xlu0 %v276, 126
    %v427 = vpop.permute.xlu0 %426
    %v428 = vsel %vm40, %v427, 0
    %430 = vmatprep.subr.mxu0 0.0
    %431 = vmatpush1.msra.mxu0 %v428
    %432 = vmatprep.subr.mxu0 0.0
    %433 = vmatpush1.msra.mxu0 0.0
    %434 = vmatprep.subr.mxu0 0.0
    %435 = vmatpush1.msra.mxu0 0.0
    %436 = vmatprep.subr.mxu0 0.0
    %437 = vmatpush1.msra.mxu0 0.0
    %438 = vmatprep.subr.mxu0 0.0
    %439 = vmatpush1.msra.mxu0 0.0
    %440 = vmatprep.subr.mxu0 0.0
    %441 = vmatpush1.msra.mxu0 0.0
    %442 = vmatprep.subr.mxu0 0.0
    %443 = vmatpush1.msra.mxu0 0.0
    %444 = vmatprep.subr.mxu0 0.0
    %445 = vmatpush1.msra.mxu0 0.0
    %446 = vmatprep.subr.mxu0 0.0
    %447 = vmatpush1.msra.mxu0 0.0
    %448 = vmatprep.subr.mxu0 0.0
    %449 = vmatpush1.msra.mxu0 0.0
    %450 = vmatprep.subr.mxu0 0.0
    %451 = vmatpush1.msra.mxu0 0.0
    %452 = vmatprep.subr.mxu0 0.0
    %453 = vmatpush1.msra.mxu0 0.0
    %454 = vmatprep.subr.mxu0 0.0
    %455 = vmatpush1.msra.mxu0 0.0
    %456 = vmatprep.subr.mxu0 0.0
    %457 = vmatpush1.msra.mxu0 0.0
    %458 = vmatprep.subr.mxu0 0.0
    %459 = vmatpush1.msra.mxu0 0.0
    %460 = vmatprep.subr.mxu0 0.0
    %461 = vmatpush1.msra.mxu0 0.0
    %462 = vmatprep.subr.mxu0 0.0
    %463 = vmatpush1.msra.mxu0 0.0
    %464 = vmatprep.subr.mxu0 0.0
    %465 = vmatpush1.msra.mxu0 0.0
    %466 = vmatprep.subr.mxu0 0.0
    %467 = vmatpush1.msra.mxu0 0.0
    %468 = vmatprep.subr.mxu0 0.0
    %469 = vmatpush1.msra.mxu0 0.0
    %470 = vmatprep.subr.mxu0 0.0
    %471 = vmatpush1.msra.mxu0 0.0
    %472 = vmatprep.subr.mxu0 0.0
    %473 = vmatpush1.msra.mxu0 0.0
    %474 = vmatprep.subr.mxu0 0.0
    %475 = vmatpush1.msra.mxu0 0.0
    %476 = vmatprep.subr.mxu0 0.0
    %477 = vmatpush1.msra.mxu0 0.0
    %478 = vmatprep.subr.mxu0 0.0
    %479 = vmatpush1.msra.mxu0 0.0
    %480 = vmatprep.subr.mxu0 0.0
    %481 = vmatpush1.msra.mxu0 0.0
    %482 = vmatprep.subr.mxu0 0.0
    %483 = vmatpush1.msra.mxu0 0.0
    %484 = vmatprep.subr.mxu0 0.0
    %485 = vmatpush1.msra.mxu0 0.0
    %486 = vmatprep.subr.mxu0 0.0
    %487 = vmatpush1.msra.mxu0 0.0
    %488 = vmatprep.subr.mxu0 0.0
    %489 = vmatpush1.msra.mxu0 0.0
    %490 = vmatprep.subr.mxu0 0.0
    %491 = vmatpush1.msra.mxu0 0.0
    %492 = vmatprep.subr.mxu0 0.0
    %493 = vmatpush1.msra.mxu0 0.0
    %494 = vmatprep.mubr.f32.mxu0 0.0
    %495 = vmatmul.mubr.f32.gmra.mrb[0].mxu0 %v196
    %v496 = vpop.f32.mrb[0].mxu0
    %v497 = vadd.f32 0.0, %v496
    %v498 = vpop.f32.mrb[0].mxu0
    %499 = vdwg.mxu0
    %v500 = vadd.f32 %v425, %v497
    %vm501 = vcmp.gt.f32.partialorder %v500, 0.0
    %v502 = vmul.f32 %v500, 0.2
    %v503 = vsel %vm501, %v500, %v502
    %504 = vst.msk [vmem:[#allocation3 + $0x8] sm:$0xff] %vm274, %v503
    // Predicated region
    $region14: #{tpu_custom_call.1} parent=1 // pred_check
      _
    $region15: #{tpu_custom_call.1} parent=1 // pred_check_branch
      %506 = sbr.rel (0) target = $region17
    $region16: #{tpu_custom_call.1} parent=1 // pred_region
      %s508 = ssub.s32 256, 256
      %509 = vsyncadd [#allocation4], %s508
      %s510 = sshll.u32 [#allocation3], 4
      %s511 = int_to_ptr.vmem [resolvable:$true] %s510
      %516 = dma.vmem_to_hbm [thread:$0]  %s511, 256, %s3, [#allocation4], 128, 128, 8
    $region17: #{tpu_custom_call.1} parent=1 // pred_fallthru
      _
    // Predicated region
    $region18: #{tpu_custom_call.1} parent=1 // pred_check
      _
    $region19: #{tpu_custom_call.1} parent=1 // pred_check_branch
      %518 = sbr.rel (0) target = $region21
    $region20: #{tpu_custom_call.1} parent=1 // pred_region
      %519 = dma.done [#allocation4], 256
    $region21: #{tpu_custom_call.1} parent=1 // pred_fallthru
      _
    %520 = vsyncpa [#allocation4], 1

</llo_original>
